<compile_context>
chip_gen: v7x
topology: tpu7x:2x2x1
jax: 0.10.0
libtpu: 0.0.40
codegen_flags: <defaults>
</compile_context>

<pallas_src>
import functools
import math

import jax
import jax.numpy as jnp
from jax.experimental import pallas as pl
from jax.experimental.pallas import tpu as pltpu


def _round_up(x, m):
    return ((x + m - 1) // m) * m


# --------------------------- Pallas kernels --------------------------------

def _conv_matmul_kernel(a_ref, b_ref, bias_ref, o_ref):
    # a: (Coutp, Kp) bf16 weights, b: (Kp, tn) bf16 im2col patches,
    # bias: (Coutp, 1) f32, o: (Coutp, tn) f32   (lane-dense output)
    acc = jnp.dot(a_ref[...], b_ref[...], preferred_element_type=jnp.float32)
    o_ref[...] = acc + bias_ref[...]


def _in_relu_kernel(x_ref, o_ref, *, eps):
    # One row per (c, n) instance; reduction over H*W lanes. Biased variance,
    # matching F.instance_norm / nn.InstanceNorm2d (affine=False, no running stats).
    x = x_ref[...]                                                  # (tr, HW) f32
    mean = jnp.mean(x, axis=-1, keepdims=True)
    var = jnp.mean(jnp.square(x - mean), axis=-1, keepdims=True)
    y = (x - mean) * jax.lax.rsqrt(var + eps)                       # rsqrt -> EUP
    o_ref[...] = jnp.maximum(y, 0.0)                                # fused ReLU


def _in_add_kernel(x_ref, r_ref, o_ref, *, eps):
    x = x_ref[...]
    mean = jnp.mean(x, axis=-1, keepdims=True)
    var = jnp.mean(jnp.square(x - mean), axis=-1, keepdims=True)
    o_ref[...] = (x - mean) * jax.lax.rsqrt(var + eps) + r_ref[...]  # fused residual


# --------------------------- conv wrapper -----------------------------------

def conv3x3_bias(x_cnhw, w, b, *, tn=512):
    """3x3 conv, stride 1, zero pad 1, fused bias.
    x: (Cin, N, H, W) f32; w: (Cout, Cin, 3, 3); b: (Cout,).  Returns (Cout, N, H, W) f32."""
    Cin, N, H, W = x_cnhw.shape
    Cout = w.shape[0]
    KH = KW = 3
    K = KH * KW * Cin
    M = N * H * W

    # im2col built directly in bf16 (halves HBM traffic of the patch matrix).
    # TODO(synk): stream the 9 taps via a reduction grid axis + in-kernel shifted-window
    # DMA instead of materializing the 9x-inflated im2col matrix in HBM.
    xp = jnp.pad(x_cnhw, ((0, 0), (0, 0), (1, 1), (1, 1))).astype(jnp.bfloat16)
    taps = [xp[:, :, kh:kh + H, kw:kw + W] for kh in range(KH) for kw in range(KW)]
    bmat = jnp.stack(taps, axis=0).reshape(K, M)          # rows ordered (kh, kw, cin)

    # Zero-pad K to a lane-aligned multiple of 128, Cout to a sublane multiple of 8,
    # M to the lane tile (all no-ops for the shapes used here -> no extra HBM copies).
    Kp = _round_up(K, 128)
    Coutp = _round_up(Cout, 8)
    tn = min(tn, _round_up(M, 128))
    Mp = _round_up(M, tn)
    if (Kp, Mp) != (K, M):
        bmat = jnp.pad(bmat, ((0, Kp - K), (0, Mp - M)))

    amat = jnp.transpose(w, (0, 2, 3, 1)).reshape(Cout, K).astype(jnp.bfloat16)
    if (Coutp, Kp) != (Cout, K):
        amat = jnp.pad(amat, ((0, Coutp - Cout), (0, Kp - K)))
    bias = jnp.pad(b.astype(jnp.float32), (0, Coutp - Cout)).reshape(Coutp, 1)

    out = pl.pallas_call(
        _conv_matmul_kernel,
        out_shape=jax.ShapeDtypeStruct((Coutp, Mp), jnp.float32),
        grid=(Mp // tn,),
        in_specs=[
            pl.BlockSpec((Coutp, Kp), lambda j: (0, 0)),   # weights (resident)
            pl.BlockSpec((Kp, tn), lambda j: (0, j)),      # patch tile
            pl.BlockSpec((Coutp, 1), lambda j: (0, 0)),    # bias (resident)
        ],
        out_specs=pl.BlockSpec((Coutp, tn), lambda j: (0, j)),
        compiler_params=pltpu.CompilerParams(dimension_semantics=("parallel",)),
    )(amat, bmat, bias)
    return out[:Cout, :M].reshape(Cout, N, H, W)


# --------------------------- instance norm wrappers --------------------------

def _row_tile(R, HW, *, bytes_per_elem=4, budget=2 * 1024 * 1024, max_tile=512):
    """VMEM-bounded, sublane-aligned row tile for the (R, HW) instance-norm layout."""
    tr = min(max_tile, max(8, budget // (bytes_per_elem * HW)))
    tr = max(8, (tr // 8) * 8)
    if R <= tr or R % 8 != 0:
        return R, R                       # single full block
    return tr, _round_up(R, tr)


def _instance_norm_call(kernel, inputs, R, HW, eps):
    tr, Rp = _row_tile(R, HW)
    if Rp != R:
        inputs = [jnp.pad(t, ((0, Rp - R), (0, 0))) for t in inputs]
    spec = pl.BlockSpec((tr, HW), lambda i: (i, 0))
    out = pl.pallas_call(
        functools.partial(kernel, eps=eps),
        out_shape=jax.ShapeDtypeStruct((Rp, HW), jnp.float32),
        grid=(Rp // tr,),
        in_specs=[spec] * len(inputs),
        out_specs=spec,
        compiler_params=pltpu.CompilerParams(dimension_semantics=("parallel",)),
    )(*inputs)
    return out[:R]


def instance_norm_relu(x_rows, eps=1e-5):
    R, HW = x_rows.shape
    return _instance_norm_call(_in_relu_kernel, [x_rows], R, HW, eps)


def instance_norm_add(x_rows, res_rows, eps=1e-5):
    R, HW = x_rows.shape
    return _instance_norm_call(_in_add_kernel, [x_rows, res_rows], R, HW, eps)


# --------------------------- ResBlock forward --------------------------------

def res_block_forward(params, x_nchw, eps=1e-5):
    """ResBlock(dim, norm='in', activation='relu', pad_type='zero'), eval semantics."""
    N, C, H, W = x_nchw.shape
    # Single boundary transpose into the channel-major internal layout (C, N, H, W).
    x_cn = jnp.transpose(x_nchw.astype(jnp.float32), (1, 0, 2, 3))

    # conv1 + bias -> InstanceNorm + ReLU (fused)
    y = conv3x3_bias(x_cn, params["w1"], params["b1"])
    y = instance_norm_relu(y.reshape(C * N, H * W), eps=eps)

    # conv2 + bias -> InstanceNorm + residual add (fused)
    y = conv3x3_bias(y.reshape(C, N, H, W), params["w2"], params["b2"])
    y = instance_norm_add(y.reshape(C * N, H * W),
                          x_cn.reshape(C * N, H * W), eps=eps)

    return jnp.transpose(y.reshape(C, N, H, W), (1, 0, 2, 3))     # back to NCHW


# --------------------------- params / reference ------------------------------

def init_res_block(key, dim):
    def init_conv(k):
        kw, kb = jax.random.split(k)
        bound = 1.0 / math.sqrt(dim * 3 * 3)           # PyTorch Conv2d default init
        w = jax.random.uniform(kw, (dim, dim, 3, 3), jnp.float32, -bound, bound)
        b = jax.random.uniform(kb, (dim,), jnp.float32, -bound, bound)
        return w, b
    k1, k2 = jax.random.split(key)
    w1, b1 = init_conv(k1)
    w2, b2 = init_conv(k2)
    return {"w1": w1, "b1": b1, "w2": w2, "b2": b2}


def res_block_reference(params, x, eps=1e-5):
    """Pure-JAX reference with the same bf16-operand / f32-accumulate convolution."""
    def conv(x, w, b):
        y = jax.lax.conv_general_dilated(
            x.astype(jnp.bfloat16), w.astype(jnp.bfloat16),
            window_strides=(1, 1), padding=((1, 1), (1, 1)),
            dimension_numbers=("NCHW", "OIHW", "NCHW"),
            preferred_element_type=jnp.float32)
        return y + b[None, :, None, None]

    def inorm(y):
        mean = jnp.mean(y, axis=(2, 3), keepdims=True)
        var = jnp.mean(jnp.square(y - mean), axis=(2, 3), keepdims=True)
        return (y - mean) * jax.lax.rsqrt(var + eps)

    y = jnp.maximum(inorm(conv(x, params["w1"], params["b1"])), 0.0)
    y = inorm(conv(y, params["w2"], params["b2"]))
    return y + x


# --------------------------- main ---------------------------------------------

if __name__ == "__main__":
    key = jax.random.PRNGKey(0)
    pkey, xkey = jax.random.split(key)

    N, C, H, W = 2, 32, 16, 16                 # ResBlock(dim=32) on a 16x16 feature map
    params = init_res_block(pkey, C)
    x = jax.random.normal(xkey, (N, C, H, W), jnp.float32)

    fwd = jax.jit(res_block_forward)
    out = fwd(params, x)
    jax.block_until_ready(out)

    assert out.shape == (N, C, H, W)
    assert bool(jnp.all(jnp.isfinite(out)))

    ref = res_block_reference(params, x)
    max_err = float(jnp.max(jnp.abs(out - ref)))
    assert max_err < 2e-2, f"max abs error vs reference too large: {max_err}"

    print("KERNEL_OK")
</pallas_src>

<mosaic_0001>
module attributes {stable_mosaic.version = 11 : i64} {
  func.func @_conv_matmul_kernel(%arg0: i32, %arg1: memref<32x384xbf16, #tpu.memory_space<vmem>>, %arg2: memref<384x512xbf16, #tpu.memory_space<vmem>>, %arg3: memref<32x1xf32, #tpu.memory_space<vmem>>, %arg4: memref<32x512xf32, #tpu.memory_space<vmem>>) attributes {dimension_semantics = [#tpu.dimension_semantics<parallel>], iteration_bounds = array<i64: 1>, scalar_prefetch = 0 : i64, scratch_operands = 0 : i64, tpu.core_type = #tpu.core_type<tc>, window_params = [{pipeline_mode = #tpu.pipeline_mode<synchronous>, transform_indices = @transform_0, window_bounds = array<i64: 32, 384>}, {transform_indices = @transform_1, window_bounds = array<i64: 384, 512>}, {pipeline_mode = #tpu.pipeline_mode<synchronous>, transform_indices = @transform_2, window_bounds = array<i64: 32, 1>}, {transform_indices = @transform_3, window_bounds = array<i64: 32, 512>}]} {
    %c0 = arith.constant 0 : index
    %c0_0 = arith.constant 0 : index
    %0 = vector.load %arg1[%c0, %c0_0] : memref<32x384xbf16, #tpu.memory_space<vmem>>, vector<32x384xbf16>
    %c0_1 = arith.constant 0 : index
    %c0_2 = arith.constant 0 : index
    %1 = vector.load %arg2[%c0_1, %c0_2] : memref<384x512xbf16, #tpu.memory_space<vmem>>, vector<384x512xbf16>
    %cst = arith.constant dense<0.000000e+00> : vector<32x512xf32>
    %2 = tpu.matmul %0, %1, %cst {dimension_numbers = #tpu.dot_dimension_numbers<[1], [0], [0], [1], [0, 0, 1, 1], [], []>} : vector<32x384xbf16>, vector<384x512xbf16>, vector<32x512xf32> -> vector<32x512xf32>
    %c0_3 = arith.constant 0 : index
    %c0_4 = arith.constant 0 : index
    %3 = vector.load %arg3[%c0_3, %c0_4] : memref<32x1xf32, #tpu.memory_space<vmem>>, vector<32x1xf32>
    %4 = vector.broadcast %3 : vector<32x1xf32> to vector<32x512xf32>
    %5 = arith.addf %2, %4 : vector<32x512xf32>
    %c0_5 = arith.constant 0 : index
    %c0_6 = arith.constant 0 : index
    %6 = vector.load %arg4[%c0_5, %c0_6] : memref<32x512xf32, #tpu.memory_space<vmem>>, vector<32x512xf32>
    tpu.vector_store %arg4[%c0_5, %c0_6], %5 {strides = array<i32>} : memref<32x512xf32, #tpu.memory_space<vmem>>, vector<32x512xf32>,
    return
  }
  func.func @transform_0(%arg0: i32) -> (i32, i32) {
    %c0_i32 = arith.constant 0 : i32
    %c0_i32_0 = arith.constant 0 : i32
    %c0_i32_1 = arith.constant 0 : i32
    return %c0_i32, %c0_i32_0 : i32, i32
  }
  func.func @transform_1(%arg0: i32) -> (i32, i32) {
    %c0_i32 = arith.constant 0 : i32
    %c0_i32_0 = arith.constant 0 : i32
    return %c0_i32, %arg0 : i32, i32
  }
  func.func @transform_2(%arg0: i32) -> (i32, i32) {
    %c0_i32 = arith.constant 0 : i32
    %c0_i32_0 = arith.constant 0 : i32
    %c0_i32_1 = arith.constant 0 : i32
    return %c0_i32, %c0_i32_0 : i32, i32
  }
  func.func @transform_3(%arg0: i32) -> (i32, i32) {
    %c0_i32 = arith.constant 0 : i32
    %c0_i32_0 = arith.constant 0 : i32
    return %c0_i32, %arg0 : i32, i32
  }
}

module attributes {stable_mosaic.version = 11 : i64} {
  func.func @_in_relu_kernel(%arg0: i32, %arg1: memref<64x256xf32, #tpu.memory_space<vmem>>, %arg2: memref<64x256xf32, #tpu.memory_space<vmem>>) attributes {dimension_semantics = [#tpu.dimension_semantics<parallel>], iteration_bounds = array<i64: 1>, scalar_prefetch = 0 : i64, scratch_operands = 0 : i64, tpu.core_type = #tpu.core_type<tc>, window_params = [{transform_indices = @transform_0, window_bounds = array<i64: 64, 256>}, {transform_indices = @transform_1, window_bounds = array<i64: 64, 256>}]} {
    %c0 = arith.constant 0 : index
    %c0_0 = arith.constant 0 : index
    %0 = vector.load %arg1[%c0, %c0_0] : memref<64x256xf32, #tpu.memory_space<vmem>>, vector<64x256xf32>
    %cst = arith.constant dense<0.000000e+00> : vector<64xf32>
    %1 = vector.multi_reduction <add>, %0, %cst [1] : vector<64x256xf32> to vector<64xf32>
    %2 = vector.shape_cast %1 : vector<64xf32> to vector<64x1xf32>
    %cst_1 = arith.constant 2.560000e+02 : f32
    %3 = vector.broadcast %cst_1 : f32 to vector<64x1xf32>
    %4 = arith.divf %2, %3 : vector<64x1xf32>
    %5 = vector.broadcast %4 : vector<64x1xf32> to vector<64x256xf32>
    %6 = arith.subf %0, %5 : vector<64x256xf32>
    %7 = arith.mulf %6, %6 : vector<64x256xf32>
    %cst_2 = arith.constant dense<0.000000e+00> : vector<64xf32>
    %8 = vector.multi_reduction <add>, %7, %cst_2 [1] : vector<64x256xf32> to vector<64xf32>
    %9 = vector.shape_cast %8 : vector<64xf32> to vector<64x1xf32>
    %cst_3 = arith.constant 2.560000e+02 : f32
    %10 = vector.broadcast %cst_3 : f32 to vector<64x1xf32>
    %11 = arith.divf %9, %10 : vector<64x1xf32>
    %12 = vector.broadcast %4 : vector<64x1xf32> to vector<64x256xf32>
    %13 = arith.subf %0, %12 : vector<64x256xf32>
    %cst_4 = arith.constant 9.99999974E-6 : f32
    %14 = vector.broadcast %cst_4 : f32 to vector<64x1xf32>
    %15 = arith.addf %11, %14 : vector<64x1xf32>
    %16 = math.rsqrt %15 : vector<64x1xf32>
    %17 = vector.broadcast %16 : vector<64x1xf32> to vector<64x256xf32>
    %18 = arith.mulf %13, %17 : vector<64x256xf32>
    %cst_5 = arith.constant 0.000000e+00 : f32
    %19 = vector.broadcast %cst_5 : f32 to vector<64x256xf32>
    %20 = arith.maximumf %18, %19 : vector<64x256xf32>
    %c0_6 = arith.constant 0 : index
    %c0_7 = arith.constant 0 : index
    %21 = vector.load %arg2[%c0_6, %c0_7] : memref<64x256xf32, #tpu.memory_space<vmem>>, vector<64x256xf32>
    tpu.vector_store %arg2[%c0_6, %c0_7], %20 {strides = array<i32>} : memref<64x256xf32, #tpu.memory_space<vmem>>, vector<64x256xf32>,
    return
  }
  func.func @transform_0(%arg0: i32) -> (i32, i32) {
    %c0_i32 = arith.constant 0 : i32
    %c0_i32_0 = arith.constant 0 : i32
    return %arg0, %c0_i32 : i32, i32
  }
  func.func @transform_1(%arg0: i32) -> (i32, i32) {
    %c0_i32 = arith.constant 0 : i32
    %c0_i32_0 = arith.constant 0 : i32
    return %arg0, %c0_i32 : i32, i32
  }
}

module attributes {stable_mosaic.version = 11 : i64} {
  func.func @_in_add_kernel(%arg0: i32, %arg1: memref<64x256xf32, #tpu.memory_space<vmem>>, %arg2: memref<64x256xf32, #tpu.memory_space<vmem>>, %arg3: memref<64x256xf32, #tpu.memory_space<vmem>>) attributes {dimension_semantics = [#tpu.dimension_semantics<parallel>], iteration_bounds = array<i64: 1>, scalar_prefetch = 0 : i64, scratch_operands = 0 : i64, tpu.core_type = #tpu.core_type<tc>, window_params = [{transform_indices = @transform_0, window_bounds = array<i64: 64, 256>}, {transform_indices = @transform_1, window_bounds = array<i64: 64, 256>}, {transform_indices = @transform_2, window_bounds = array<i64: 64, 256>}]} {
    %c0 = arith.constant 0 : index
    %c0_0 = arith.constant 0 : index
    %0 = vector.load %arg1[%c0, %c0_0] : memref<64x256xf32, #tpu.memory_space<vmem>>, vector<64x256xf32>
    %cst = arith.constant dense<0.000000e+00> : vector<64xf32>
    %1 = vector.multi_reduction <add>, %0, %cst [1] : vector<64x256xf32> to vector<64xf32>
    %2 = vector.shape_cast %1 : vector<64xf32> to vector<64x1xf32>
    %cst_1 = arith.constant 2.560000e+02 : f32
    %3 = vector.broadcast %cst_1 : f32 to vector<64x1xf32>
    %4 = arith.divf %2, %3 : vector<64x1xf32>
    %5 = vector.broadcast %4 : vector<64x1xf32> to vector<64x256xf32>
    %6 = arith.subf %0, %5 : vector<64x256xf32>
    %7 = arith.mulf %6, %6 : vector<64x256xf32>
    %cst_2 = arith.constant dense<0.000000e+00> : vector<64xf32>
    %8 = vector.multi_reduction <add>, %7, %cst_2 [1] : vector<64x256xf32> to vector<64xf32>
    %9 = vector.shape_cast %8 : vector<64xf32> to vector<64x1xf32>
    %cst_3 = arith.constant 2.560000e+02 : f32
    %10 = vector.broadcast %cst_3 : f32 to vector<64x1xf32>
    %11 = arith.divf %9, %10 : vector<64x1xf32>
    %12 = vector.broadcast %4 : vector<64x1xf32> to vector<64x256xf32>
    %13 = arith.subf %0, %12 : vector<64x256xf32>
    %cst_4 = arith.constant 9.99999974E-6 : f32
    %14 = vector.broadcast %cst_4 : f32 to vector<64x1xf32>
    %15 = arith.addf %11, %14 : vector<64x1xf32>
    %16 = math.rsqrt %15 : vector<64x1xf32>
    %17 = vector.broadcast %16 : vector<64x1xf32> to vector<64x256xf32>
    %18 = arith.mulf %13, %17 : vector<64x256xf32>
    %c0_5 = arith.constant 0 : index
    %c0_6 = arith.constant 0 : index
    %19 = vector.load %arg2[%c0_5, %c0_6] : memref<64x256xf32, #tpu.memory_space<vmem>>, vector<64x256xf32>
    %20 = arith.addf %18, %19 : vector<64x256xf32>
    %c0_7 = arith.constant 0 : index
    %c0_8 = arith.constant 0 : index
    %21 = vector.load %arg3[%c0_7, %c0_8] : memref<64x256xf32, #tpu.memory_space<vmem>>, vector<64x256xf32>
    tpu.vector_store %arg3[%c0_7, %c0_8], %20 {strides = array<i32>} : memref<64x256xf32, #tpu.memory_space<vmem>>, vector<64x256xf32>,
    return
  }
  func.func @transform_0(%arg0: i32) -> (i32, i32) {
    %c0_i32 = arith.constant 0 : i32
    %c0_i32_0 = arith.constant 0 : i32
    return %arg0, %c0_i32 : i32, i32
  }
  func.func @transform_1(%arg0: i32) -> (i32, i32) {
    %c0_i32 = arith.constant 0 : i32
    %c0_i32_0 = arith.constant 0 : i32
    return %arg0, %c0_i32 : i32, i32
  }
  func.func @transform_2(%arg0: i32) -> (i32, i32) {
    %c0_i32 = arith.constant 0 : i32
    %c0_i32_0 = arith.constant 0 : i32
    return %arg0, %c0_i32 : i32, i32
  }
}

</mosaic_0001>

<llo_original>
// kernel: res_block_forward.5
$region0: #{res_block_forward.5}
  #allocation0 [shape = 'u32[]', space=smem, size = 0x4, offset = 0x4, fixed_abs, tag = 'smem constant byte address 0x4 - core index']
  #allocation1 [shape = 'u32[144,128]{1,0:T(1,128)}', space=vmem, size = 0x12000, scoped, tag = 'internal scratch']
  %s0 = inlined_call_operand.vmem [shape: f32[64,256], index: 0, kind: input, shape index: {}]
  %s1 = inlined_call_operand.vmem [shape: f32[64,256], index: 1, kind: output, shape index: {}]
  %s2 = sld [smem:[#allocation0]]
  $region14: #{res_block_forward.5} parent=0
    _
  %s4 = ssub.s32 1, %s2
  %s5 = scalar_select 0, %s4, %s2
  // Predicated region
  $region2: #{res_block_forward.5} parent=0 // pred_check
    _
  $region3: #{res_block_forward.5} parent=0 // pred_check_branch
    %7 = sbr.rel (0) target = $region5
  $region4: #{res_block_forward.5} parent=0 // pred_region
    _
  $region5: #{res_block_forward.5} parent=0 // pred_fallthru
    _
  %v8 = vld [vmem:[%s0] sm:$0xff]
  %v9 = vld [vmem:[%s0 + $0x8] sm:$0xff]
  %v10 = vld [vmem:[%s0 + $0x10] sm:$0xff]
  %v11 = vld [vmem:[%s0 + $0x18] sm:$0xff]
  %v12 = vld [vmem:[%s0 + $0x20] sm:$0xff]
  %v13 = vld [vmem:[%s0 + $0x28] sm:$0xff]
  %v14 = vld [vmem:[%s0 + $0x30] sm:$0xff]
  %v15 = vld [vmem:[%s0 + $0x38] sm:$0xff]
  %v16 = vld [vmem:[%s0 + $0x40] sm:$0xff]
  %v17 = vld [vmem:[%s0 + $0x48] sm:$0xff]
  %v18 = vld [vmem:[%s0 + $0x50] sm:$0xff]
  %v19 = vld [vmem:[%s0 + $0x58] sm:$0xff]
  %v20 = vld [vmem:[%s0 + $0x60] sm:$0xff]
  %v21 = vld [vmem:[%s0 + $0x68] sm:$0xff]
  %v22 = vld [vmem:[%s0 + $0x70] sm:$0xff]
  %v23 = vld [vmem:[%s0 + $0x78] sm:$0xff]
  %v24 = vadd.f32 %v8, %v9
  %25 = vadd.xlane.f32.xlu0 %v24
  %v26 = vpop.xlane.xlu0 %25
  %v27 = vadd.f32 %v10, %v11
  %28 = vadd.xlane.f32.xlu0 %v27
  %v29 = vpop.xlane.xlu0 %28
  %v30 = vadd.f32 %v12, %v13
  %31 = vadd.xlane.f32.xlu0 %v30
  %v32 = vpop.xlane.xlu0 %31
  %v33 = vadd.f32 %v14, %v15
  %34 = vadd.xlane.f32.xlu0 %v33
  %v35 = vpop.xlane.xlu0 %34
  %v36 = vadd.f32 %v16, %v17
  %37 = vadd.xlane.f32.xlu0 %v36
  %v38 = vpop.xlane.xlu0 %37
  %v39 = vadd.f32 %v18, %v19
  %40 = vadd.xlane.f32.xlu0 %v39
  %v41 = vpop.xlane.xlu0 %40
  %v42 = vadd.f32 %v20, %v21
  %43 = vadd.xlane.f32.xlu0 %v42
  %v44 = vpop.xlane.xlu0 %43
  %v45 = vadd.f32 %v22, %v23
  %46 = vadd.xlane.f32.xlu0 %v45
  %v47 = vpop.xlane.xlu0 %46
  %v48 = vrcp.pop 256.0
  %v49 = vmul.f32 %v26, %v48
  %v50 = vmul.f32 %v29, %v48
  %v51 = vmul.f32 %v32, %v48
  %v52 = vmul.f32 %v35, %v48
  %v53 = vmul.f32 %v38, %v48
  %v54 = vmul.f32 %v41, %v48
  %v55 = vmul.f32 %v44, %v48
  %v56 = vmul.f32 %v47, %v48
  %v57 = vsub.f32 %v8, %v49
  %v58 = vsub.f32 %v9, %v49
  %v59 = vsub.f32 %v10, %v50
  %v60 = vsub.f32 %v11, %v50
  %v61 = vsub.f32 %v12, %v51
  %v62 = vsub.f32 %v13, %v51
  %v63 = vsub.f32 %v14, %v52
  %v64 = vsub.f32 %v15, %v52
  %v65 = vsub.f32 %v16, %v53
  %v66 = vsub.f32 %v17, %v53
  %v67 = vsub.f32 %v18, %v54
  %v68 = vsub.f32 %v19, %v54
  %v69 = vsub.f32 %v20, %v55
  %v70 = vsub.f32 %v21, %v55
  %v71 = vsub.f32 %v22, %v56
  %v72 = vsub.f32 %v23, %v56
  %v73 = vmul.f32 %v57, %v57
  %v74 = vmul.f32 %v58, %v58
  %v75 = vmul.f32 %v59, %v59
  %v76 = vmul.f32 %v60, %v60
  %v77 = vmul.f32 %v61, %v61
  %v78 = vmul.f32 %v62, %v62
  %v79 = vmul.f32 %v63, %v63
  %v80 = vmul.f32 %v64, %v64
  %v81 = vmul.f32 %v65, %v65
  %v82 = vmul.f32 %v66, %v66
  %v83 = vmul.f32 %v67, %v67
  %v84 = vmul.f32 %v68, %v68
  %v85 = vmul.f32 %v69, %v69
  %v86 = vmul.f32 %v70, %v70
  %v87 = vmul.f32 %v71, %v71
  %v88 = vmul.f32 %v72, %v72
  %v89 = vadd.f32 %v73, %v74
  %90 = vadd.xlane.f32.xlu0 %v89
  %v91 = vpop.xlane.xlu0 %90
  %v92 = vadd.f32 %v75, %v76
  %93 = vadd.xlane.f32.xlu0 %v92
  %v94 = vpop.xlane.xlu0 %93
  %v95 = vadd.f32 %v77, %v78
  %96 = vadd.xlane.f32.xlu0 %v95
  %v97 = vpop.xlane.xlu0 %96
  %v98 = vadd.f32 %v79, %v80
  %99 = vadd.xlane.f32.xlu0 %v98
  %v100 = vpop.xlane.xlu0 %99
  %v101 = vadd.f32 %v81, %v82
  %102 = vadd.xlane.f32.xlu0 %v101
  %v103 = vpop.xlane.xlu0 %102
  %v104 = vadd.f32 %v83, %v84
  %105 = vadd.xlane.f32.xlu0 %v104
  %v106 = vpop.xlane.xlu0 %105
  %v107 = vadd.f32 %v85, %v86
  %108 = vadd.xlane.f32.xlu0 %v107
  %v109 = vpop.xlane.xlu0 %108
  %v110 = vadd.f32 %v87, %v88
  %111 = vadd.xlane.f32.xlu0 %v110
  %v112 = vpop.xlane.xlu0 %111
  %v113 = vmul.f32 %v91, %v48
  %v114 = vmul.f32 %v94, %v48
  %v115 = vmul.f32 %v97, %v48
  %v116 = vmul.f32 %v100, %v48
  %v117 = vmul.f32 %v103, %v48
  %v118 = vmul.f32 %v106, %v48
  %v119 = vmul.f32 %v109, %v48
  %v120 = vmul.f32 %v112, %v48
  %v121 = vadd.f32 %v113, 1e-05
  %v122 = vadd.f32 %v114, 1e-05
  %v123 = vadd.f32 %v115, 1e-05
  %v124 = vadd.f32 %v116, 1e-05
  %v125 = vadd.f32 %v117, 1e-05
  %v126 = vadd.f32 %v118, 1e-05
  %v127 = vadd.f32 %v119, 1e-05
  %v128 = vadd.f32 %v120, 1e-05
  %v129 = vrsqrt.pop %v121
  %v130 = vrsqrt.pop %v122
  %v131 = vrsqrt.pop %v123
  %v132 = vrsqrt.pop %v124
  %v133 = vrsqrt.pop %v125
  %v134 = vrsqrt.pop %v126
  %v135 = vrsqrt.pop %v127
  %v136 = vrsqrt.pop %v128
  %v137 = vmul.f32 %v57, %v129
  %v138 = vmul.f32 %v58, %v129
  %v139 = vmul.f32 %v59, %v130
  %v140 = vmul.f32 %v60, %v130
  %v141 = vmul.f32 %v61, %v131
  %v142 = vmul.f32 %v62, %v131
  %v143 = vmul.f32 %v63, %v132
  %v144 = vmul.f32 %v64, %v132
  %v145 = vmul.f32 %v65, %v133
  %v146 = vmul.f32 %v66, %v133
  %v147 = vmul.f32 %v67, %v134
  %v148 = vmul.f32 %v68, %v134
  %v149 = vmul.f32 %v69, %v135
  %v150 = vmul.f32 %v70, %v135
  %v151 = vmul.f32 %v71, %v136
  %v152 = vmul.f32 %v72, %v136
  %v153 = vmax.f32 %v137, 0.0
  %v154 = vmax.f32 %v138, 0.0
  %v155 = vmax.f32 %v139, 0.0
  %v156 = vmax.f32 %v140, 0.0
  %v157 = vmax.f32 %v141, 0.0
  %v158 = vmax.f32 %v142, 0.0
  %v159 = vmax.f32 %v143, 0.0
  %v160 = vmax.f32 %v144, 0.0
  %v161 = vmax.f32 %v145, 0.0
  %v162 = vmax.f32 %v146, 0.0
  %v163 = vmax.f32 %v147, 0.0
  %v164 = vmax.f32 %v148, 0.0
  %v165 = vmax.f32 %v149, 0.0
  %v166 = vmax.f32 %v150, 0.0
  %v167 = vmax.f32 %v151, 0.0
  %v168 = vmax.f32 %v152, 0.0
  %169 = vst [vmem:[%s1] sm:$0xff] %v153
  %170 = vst [vmem:[%s1 + $0x8] sm:$0xff] %v154
  %171 = vst [vmem:[%s1 + $0x10] sm:$0xff] %v155
  %172 = vst [vmem:[%s1 + $0x18] sm:$0xff] %v156
  %173 = vst [vmem:[%s1 + $0x20] sm:$0xff] %v157
  %174 = vst [vmem:[%s1 + $0x28] sm:$0xff] %v158
  %175 = vst [vmem:[%s1 + $0x30] sm:$0xff] %v159
  %176 = vst [vmem:[%s1 + $0x38] sm:$0xff] %v160
  %177 = vst [vmem:[%s1 + $0x40] sm:$0xff] %v161
  %178 = vst [vmem:[%s1 + $0x48] sm:$0xff] %v162
  %179 = vst [vmem:[%s1 + $0x50] sm:$0xff] %v163
  %180 = vst [vmem:[%s1 + $0x58] sm:$0xff] %v164
  %181 = vst [vmem:[%s1 + $0x60] sm:$0xff] %v165
  %182 = vst [vmem:[%s1 + $0x68] sm:$0xff] %v166
  %183 = vst [vmem:[%s1 + $0x70] sm:$0xff] %v167
  %184 = vst [vmem:[%s1 + $0x78] sm:$0xff] %v168
  // Predicated region
  $region6: #{res_block_forward.5} parent=0 // pred_check
    _
  $region7: #{res_block_forward.5} parent=0 // pred_check_branch
    %186 = sbr.rel (0) target = $region9
  $region8: #{res_block_forward.5} parent=0 // pred_region
    _
  $region9: #{res_block_forward.5} parent=0 // pred_fallthru
    _
  // Predicated region
  $region10: #{res_block_forward.5} parent=0 // pred_check
    _
  $region11: #{res_block_forward.5} parent=0 // pred_check_branch
    %188 = sbr.rel (0) target = $region13
  $region12: #{res_block_forward.5} parent=0 // pred_region
    _
  $region13: #{res_block_forward.5} parent=0 // pred_fallthru
    _

// kernel: res_block_forward.4
$region0: #{res_block_forward.4}
  #allocation0 [shape = 'u32[]', space=smem, size = 0x4, offset = 0x4, fixed_abs, tag = 'smem constant byte address 0x4 - core index']
  #allocation1 [shape = 'u32[144,128]{1,0:T(1,128)}', space=vmem, size = 0x12000, scoped, tag = 'internal scratch']
  %s0 = inlined_call_operand.vmem [shape: bf16[32,384], index: 0, kind: input, shape index: {}]
  %s1 = inlined_call_operand.vmem [shape: bf16[384,512], index: 1, kind: input, shape index: {}]
  %s2 = inlined_call_operand.vmem [shape: f32[32,1], index: 2, kind: input, shape index: {}]
  %s3 = inlined_call_operand.vmem [shape: f32[32,512], index: 3, kind: output, shape index: {}]
  %s4 = sld [smem:[#allocation0]]
  $region22: #{res_block_forward.4} parent=0
    _
  %s6 = ssub.s32 1, %s4
  %s7 = scalar_select 0, %s6, %s4
  // Predicated region
  $region2: #{res_block_forward.4} parent=0 // pred_check
    _
  $region3: #{res_block_forward.4} parent=0 // pred_check_branch
    %9 = sbr.rel (0) target = $region5
  $region4: #{res_block_forward.4} parent=0 // pred_region
    _
  $region5: #{res_block_forward.4} parent=0 // pred_fallthru
    _
  // Predicated region
  $region6: #{res_block_forward.4} parent=0 // pred_check
    _
  $region7: #{res_block_forward.4} parent=0 // pred_check_branch
    %11 = sbr.rel (0) target = $region9
  $region8: #{res_block_forward.4} parent=0 // pred_region
    _
  $region9: #{res_block_forward.4} parent=0 // pred_fallthru
    _
  // Predicated region
  $region10: #{res_block_forward.4} parent=0 // pred_check
    _
  $region11: #{res_block_forward.4} parent=0 // pred_check_branch
    %13 = sbr.rel (0) target = $region13
  $region12: #{res_block_forward.4} parent=0 // pred_region
    _
  $region13: #{res_block_forward.4} parent=0 // pred_fallthru
    _
  %v15 = vld [vmem:[%s0] sm:$0xff]
  %v16 = vld [vmem:[%s0 + $0x8] sm:$0xf]
  %v17 = vld [vmem:[%s0 + $0xc] sm:$0xff]
  %v18 = vld [vmem:[%s0 + $0x14] sm:$0xf]
  %v19 = vld [vmem:[%s0 + $0x18] sm:$0xff]
  %v20 = vld [vmem:[%s0 + $0x20] sm:$0xf]
  %v21 = vld [vmem:[%s0 + $0x24] sm:$0xff]
  %v22 = vld [vmem:[%s0 + $0x2c] sm:$0xf]
  %v23 = vld [vmem:[%s1] sm:$0xff]
  %v24 = vld [vmem:[%s1 + $0x8] sm:$0xff]
  %v25 = vld [vmem:[%s1 + $0x10] sm:$0xff]
  %v26 = vld [vmem:[%s1 + $0x18] sm:$0xff]
  %v27 = vld [vmem:[%s1 + $0x20] sm:$0xff]
  %v28 = vld [vmem:[%s1 + $0x28] sm:$0xff]
  %v29 = vld [vmem:[%s1 + $0x30] sm:$0xff]
  %v30 = vld [vmem:[%s1 + $0x38] sm:$0xff]
  %v31 = vld [vmem:[%s1 + $0x40] sm:$0xff]
  %v32 = vld [vmem:[%s1 + $0x48] sm:$0xff]
  %v33 = vld [vmem:[%s1 + $0x50] sm:$0xff]
  %v34 = vld [vmem:[%s1 + $0x58] sm:$0xff]
  %v35 = vld [vmem:[%s1 + $0x60] sm:$0xff]
  %v36 = vld [vmem:[%s1 + $0x68] sm:$0xff]
  %v37 = vld [vmem:[%s1 + $0x70] sm:$0xff]
  %v38 = vld [vmem:[%s1 + $0x78] sm:$0xff]
  %v39 = vld [vmem:[%s1 + $0x80] sm:$0xff]
  %v40 = vld [vmem:[%s1 + $0x88] sm:$0xff]
  %v41 = vld [vmem:[%s1 + $0x90] sm:$0xff]
  %v42 = vld [vmem:[%s1 + $0x98] sm:$0xff]
  %v43 = vld [vmem:[%s1 + $0xa0] sm:$0xff]
  %v44 = vld [vmem:[%s1 + $0xa8] sm:$0xff]
  %v45 = vld [vmem:[%s1 + $0xb0] sm:$0xff]
  %v46 = vld [vmem:[%s1 + $0xb8] sm:$0xff]
  %v47 = vld [vmem:[%s1 + $0xc0] sm:$0xff]
  %v48 = vld [vmem:[%s1 + $0xc8] sm:$0xff]
  %v49 = vld [vmem:[%s1 + $0xd0] sm:$0xff]
  %v50 = vld [vmem:[%s1 + $0xd8] sm:$0xff]
  %v51 = vld [vmem:[%s1 + $0xe0] sm:$0xff]
  %v52 = vld [vmem:[%s1 + $0xe8] sm:$0xff]
  %v53 = vld [vmem:[%s1 + $0xf0] sm:$0xff]
  %v54 = vld [vmem:[%s1 + $0xf8] sm:$0xff]
  %v55 = vld [vmem:[%s1 + $0x100] sm:$0xff]
  %v56 = vld [vmem:[%s1 + $0x108] sm:$0xff]
  %v57 = vld [vmem:[%s1 + $0x110] sm:$0xff]
  %v58 = vld [vmem:[%s1 + $0x118] sm:$0xff]
  %v59 = vld [vmem:[%s1 + $0x120] sm:$0xff]
  %v60 = vld [vmem:[%s1 + $0x128] sm:$0xff]
  %v61 = vld [vmem:[%s1 + $0x130] sm:$0xff]
  %v62 = vld [vmem:[%s1 + $0x138] sm:$0xff]
  %v63 = vld [vmem:[%s1 + $0x140] sm:$0xff]
  %v64 = vld [vmem:[%s1 + $0x148] sm:$0xff]
  %v65 = vld [vmem:[%s1 + $0x150] sm:$0xff]
  %v66 = vld [vmem:[%s1 + $0x158] sm:$0xff]
  %v67 = vld [vmem:[%s1 + $0x160] sm:$0xff]
  %v68 = vld [vmem:[%s1 + $0x168] sm:$0xff]
  %v69 = vld [vmem:[%s1 + $0x170] sm:$0xff]
  %v70 = vld [vmem:[%s1 + $0x178] sm:$0xff]
  %v71 = vld [vmem:[%s1 + $0x180] sm:$0xff]
  %v72 = vld [vmem:[%s1 + $0x188] sm:$0xff]
  %v73 = vld [vmem:[%s1 + $0x190] sm:$0xff]
  %v74 = vld [vmem:[%s1 + $0x198] sm:$0xff]
  %v75 = vld [vmem:[%s1 + $0x1a0] sm:$0xff]
  %v76 = vld [vmem:[%s1 + $0x1a8] sm:$0xff]
  %v77 = vld [vmem:[%s1 + $0x1b0] sm:$0xff]
  %v78 = vld [vmem:[%s1 + $0x1b8] sm:$0xff]
  %v79 = vld [vmem:[%s1 + $0x1c0] sm:$0xff]
  %v80 = vld [vmem:[%s1 + $0x1c8] sm:$0xff]
  %v81 = vld [vmem:[%s1 + $0x1d0] sm:$0xff]
  %v82 = vld [vmem:[%s1 + $0x1d8] sm:$0xff]
  %v83 = vld [vmem:[%s1 + $0x1e0] sm:$0xff]
  %v84 = vld [vmem:[%s1 + $0x1e8] sm:$0xff]
  %v85 = vld [vmem:[%s1 + $0x1f0] sm:$0xff]
  %v86 = vld [vmem:[%s1 + $0x1f8] sm:$0xff]
  %v87 = vld [vmem:[%s1 + $0x200] sm:$0xff]
  %v88 = vld [vmem:[%s1 + $0x208] sm:$0xff]
  %v89 = vld [vmem:[%s1 + $0x210] sm:$0xff]
  %v90 = vld [vmem:[%s1 + $0x218] sm:$0xff]
  %v91 = vld [vmem:[%s1 + $0x220] sm:$0xff]
  %v92 = vld [vmem:[%s1 + $0x228] sm:$0xff]
  %v93 = vld [vmem:[%s1 + $0x230] sm:$0xff]
  %v94 = vld [vmem:[%s1 + $0x238] sm:$0xff]
  %v95 = vld [vmem:[%s1 + $0x240] sm:$0xff]
  %v96 = vld [vmem:[%s1 + $0x248] sm:$0xff]
  %v97 = vld [vmem:[%s1 + $0x250] sm:$0xff]
  %v98 = vld [vmem:[%s1 + $0x258] sm:$0xff]
  %v99 = vld [vmem:[%s1 + $0x260] sm:$0xff]
  %v100 = vld [vmem:[%s1 + $0x268] sm:$0xff]
  %v101 = vld [vmem:[%s1 + $0x270] sm:$0xff]
  %v102 = vld [vmem:[%s1 + $0x278] sm:$0xff]
  %v103 = vld [vmem:[%s1 + $0x280] sm:$0xff]
  %v104 = vld [vmem:[%s1 + $0x288] sm:$0xff]
  %v105 = vld [vmem:[%s1 + $0x290] sm:$0xff]
  %v106 = vld [vmem:[%s1 + $0x298] sm:$0xff]
  %v107 = vld [vmem:[%s1 + $0x2a0] sm:$0xff]
  %v108 = vld [vmem:[%s1 + $0x2a8] sm:$0xff]
  %v109 = vld [vmem:[%s1 + $0x2b0] sm:$0xff]
  %v110 = vld [vmem:[%s1 + $0x2b8] sm:$0xff]
  %v111 = vld [vmem:[%s1 + $0x2c0] sm:$0xff]
  %v112 = vld [vmem:[%s1 + $0x2c8] sm:$0xff]
  %v113 = vld [vmem:[%s1 + $0x2d0] sm:$0xff]
  %v114 = vld [vmem:[%s1 + $0x2d8] sm:$0xff]
  %v115 = vld [vmem:[%s1 + $0x2e0] sm:$0xff]
  %v116 = vld [vmem:[%s1 + $0x2e8] sm:$0xff]
  %v117 = vld [vmem:[%s1 + $0x2f0] sm:$0xff]
  %v118 = vld [vmem:[%s1 + $0x2f8] sm:$0xff]
  %v119 = vld [vmem:[%s2] sm:$0xff]
  %v120 = vld [vmem:[%s2 + $0x8] sm:$0xff]
  %v121 = vld [vmem:[%s2 + $0x10] sm:$0xff]
  %v122 = vld [vmem:[%s2 + $0x18] sm:$0xff]
  %124 = vset.pattern.permute.xlu0 0
  %125 = vperm.xlu0 %124, %v119
  %v126 = vpop.permute.xlu0 %125
  %129 = vset.pattern.permute.xlu0 0
  %130 = vperm.xlu0 %129, %v120
  %v131 = vpop.permute.xlu0 %130
  %134 = vset.pattern.permute.xlu0 0
  %135 = vperm.xlu0 %134, %v121
  %v136 = vpop.permute.xlu0 %135
  %139 = vset.pattern.permute.xlu0 0
  %140 = vperm.xlu0 %139, %v122
  %v141 = vpop.permute.xlu0 %140
  %v151 = vunpack.c.l.b16 %v15
  %v152 = vunpack.c.h.b16 %v15
  %v153 = vunpack.c.l.b16 %v16
  %v154 = vunpack.c.l.b16 %v17
  %v155 = vunpack.c.h.b16 %v17
  %v156 = vunpack.c.l.b16 %v18
  %v157 = vunpack.c.l.b16 %v19
  %v158 = vunpack.c.h.b16 %v19
  %v159 = vunpack.c.l.b16 %v20
  %v160 = vunpack.c.l.b16 %v21
  %v161 = vunpack.c.h.b16 %v21
  %v162 = vunpack.c.l.b16 %v22
  %v163 = vpack.c.b16 %v154, %v151
  %v164 = vpack.c.b16 %v155, %v152
  %v165 = vpack.c.b16 %v156, %v153
  %v166 = vpack.c.b16 %v160, %v157
  %v167 = vpack.c.b16 %v161, %v158
  %v168 = vpack.c.b16 %v162, %v159
  %v271 = vunpack.c.l.b16 %v23
  %v272 = vunpack.c.h.b16 %v23
  %v273 = vunpack.c.l.b16 %v24
  %v274 = vunpack.c.h.b16 %v24
  %v275 = vunpack.c.l.b16 %v25
  %v276 = vunpack.c.h.b16 %v25
  %v277 = vunpack.c.l.b16 %v26
  %v278 = vunpack.c.h.b16 %v26
  %v279 = vunpack.c.l.b16 %v27
  %v280 = vunpack.c.h.b16 %v27
  %v281 = vunpack.c.l.b16 %v28
  %v282 = vunpack.c.h.b16 %v28
  %v283 = vunpack.c.l.b16 %v29
  %v284 = vunpack.c.h.b16 %v29
  %v285 = vunpack.c.l.b16 %v30
  %v286 = vunpack.c.h.b16 %v30
  %v287 = vunpack.c.l.b16 %v31
  %v288 = vunpack.c.h.b16 %v31
  %v289 = vunpack.c.l.b16 %v32
  %v290 = vunpack.c.h.b16 %v32
  %v291 = vunpack.c.l.b16 %v33
  %v292 = vunpack.c.h.b16 %v33
  %v293 = vunpack.c.l.b16 %v34
  %v294 = vunpack.c.h.b16 %v34
  %v295 = vunpack.c.l.b16 %v35
  %v296 = vunpack.c.h.b16 %v35
  %v297 = vunpack.c.l.b16 %v36
  %v298 = vunpack.c.h.b16 %v36
  %v299 = vunpack.c.l.b16 %v37
  %v300 = vunpack.c.h.b16 %v37
  %v301 = vunpack.c.l.b16 %v38
  %v302 = vunpack.c.h.b16 %v38
  %v303 = vunpack.c.l.b16 %v39
  %v304 = vunpack.c.h.b16 %v39
  %v305 = vunpack.c.l.b16 %v40
  %v306 = vunpack.c.h.b16 %v40
  %v307 = vunpack.c.l.b16 %v41
  %v308 = vunpack.c.h.b16 %v41
  %v309 = vunpack.c.l.b16 %v42
  %v310 = vunpack.c.h.b16 %v42
  %v311 = vunpack.c.l.b16 %v43
  %v312 = vunpack.c.h.b16 %v43
  %v313 = vunpack.c.l.b16 %v44
  %v314 = vunpack.c.h.b16 %v44
  %v315 = vunpack.c.l.b16 %v45
  %v316 = vunpack.c.h.b16 %v45
  %v317 = vunpack.c.l.b16 %v46
  %v318 = vunpack.c.h.b16 %v46
  %v319 = vunpack.c.l.b16 %v47
  %v320 = vunpack.c.h.b16 %v47
  %v321 = vunpack.c.l.b16 %v48
  %v322 = vunpack.c.h.b16 %v48
  %v323 = vunpack.c.l.b16 %v49
  %v324 = vunpack.c.h.b16 %v49
  %v325 = vunpack.c.l.b16 %v50
  %v326 = vunpack.c.h.b16 %v50
  %v327 = vunpack.c.l.b16 %v51
  %v328 = vunpack.c.h.b16 %v51
  %v329 = vunpack.c.l.b16 %v52
  %v330 = vunpack.c.h.b16 %v52
  %v331 = vunpack.c.l.b16 %v53
  %v332 = vunpack.c.h.b16 %v53
  %v333 = vunpack.c.l.b16 %v54
  %v334 = vunpack.c.h.b16 %v54
  %v335 = vunpack.c.l.b16 %v55
  %v336 = vunpack.c.h.b16 %v55
  %v337 = vunpack.c.l.b16 %v56
  %v338 = vunpack.c.h.b16 %v56
  %v339 = vunpack.c.l.b16 %v57
  %v340 = vunpack.c.h.b16 %v57
  %v341 = vunpack.c.l.b16 %v58
  %v342 = vunpack.c.h.b16 %v58
  %v343 = vunpack.c.l.b16 %v59
  %v344 = vunpack.c.h.b16 %v59
  %v345 = vunpack.c.l.b16 %v60
  %v346 = vunpack.c.h.b16 %v60
  %v347 = vunpack.c.l.b16 %v61
  %v348 = vunpack.c.h.b16 %v61
  %v349 = vunpack.c.l.b16 %v62
  %v350 = vunpack.c.h.b16 %v62
  %v351 = vunpack.c.l.b16 %v63
  %v352 = vunpack.c.h.b16 %v63
  %v353 = vunpack.c.l.b16 %v64
  %v354 = vunpack.c.h.b16 %v64
  %v355 = vunpack.c.l.b16 %v65
  %v356 = vunpack.c.h.b16 %v65
  %v357 = vunpack.c.l.b16 %v66
  %v358 = vunpack.c.h.b16 %v66
  %v359 = vunpack.c.l.b16 %v67
  %v360 = vunpack.c.h.b16 %v67
  %v361 = vunpack.c.l.b16 %v68
  %v362 = vunpack.c.h.b16 %v68
  %v363 = vunpack.c.l.b16 %v69
  %v364 = vunpack.c.h.b16 %v69
  %v365 = vunpack.c.l.b16 %v70
  %v366 = vunpack.c.h.b16 %v70
  %v367 = vunpack.c.l.b16 %v71
  %v368 = vunpack.c.h.b16 %v71
  %v369 = vunpack.c.l.b16 %v72
  %v370 = vunpack.c.h.b16 %v72
  %v371 = vunpack.c.l.b16 %v73
  %v372 = vunpack.c.h.b16 %v73
  %v373 = vunpack.c.l.b16 %v74
  %v374 = vunpack.c.h.b16 %v74
  %v375 = vunpack.c.l.b16 %v75
  %v376 = vunpack.c.h.b16 %v75
  %v377 = vunpack.c.l.b16 %v76
  %v378 = vunpack.c.h.b16 %v76
  %v379 = vunpack.c.l.b16 %v77
  %v380 = vunpack.c.h.b16 %v77
  %v381 = vunpack.c.l.b16 %v78
  %v382 = vunpack.c.h.b16 %v78
  %v383 = vunpack.c.l.b16 %v79
  %v384 = vunpack.c.h.b16 %v79
  %v385 = vunpack.c.l.b16 %v80
  %v386 = vunpack.c.h.b16 %v80
  %v387 = vunpack.c.l.b16 %v81
  %v388 = vunpack.c.h.b16 %v81
  %v389 = vunpack.c.l.b16 %v82
  %v390 = vunpack.c.h.b16 %v82
  %v391 = vunpack.c.l.b16 %v83
  %v392 = vunpack.c.h.b16 %v83
  %v393 = vunpack.c.l.b16 %v84
  %v394 = vunpack.c.h.b16 %v84
  %v395 = vunpack.c.l.b16 %v85
  %v396 = vunpack.c.h.b16 %v85
  %v397 = vunpack.c.l.b16 %v86
  %v398 = vunpack.c.h.b16 %v86
  %v399 = vunpack.c.l.b16 %v87
  %v400 = vunpack.c.h.b16 %v87
  %v401 = vunpack.c.l.b16 %v88
  %v402 = vunpack.c.h.b16 %v88
  %v403 = vunpack.c.l.b16 %v89
  %v404 = vunpack.c.h.b16 %v89
  %v405 = vunpack.c.l.b16 %v90
  %v406 = vunpack.c.h.b16 %v90
  %v407 = vunpack.c.l.b16 %v91
  %v408 = vunpack.c.h.b16 %v91
  %v409 = vunpack.c.l.b16 %v92
  %v410 = vunpack.c.h.b16 %v92
  %v411 = vunpack.c.l.b16 %v93
  %v412 = vunpack.c.h.b16 %v93
  %v413 = vunpack.c.l.b16 %v94
  %v414 = vunpack.c.h.b16 %v94
  %v415 = vunpack.c.l.b16 %v95
  %v416 = vunpack.c.h.b16 %v95
  %v417 = vunpack.c.l.b16 %v96
  %v418 = vunpack.c.h.b16 %v96
  %v419 = vunpack.c.l.b16 %v97
  %v420 = vunpack.c.h.b16 %v97
  %v421 = vunpack.c.l.b16 %v98
  %v422 = vunpack.c.h.b16 %v98
  %v423 = vunpack.c.l.b16 %v99
  %v424 = vunpack.c.h.b16 %v99
  %v425 = vunpack.c.l.b16 %v100
  %v426 = vunpack.c.h.b16 %v100
  %v427 = vunpack.c.l.b16 %v101
  %v428 = vunpack.c.h.b16 %v101
  %v429 = vunpack.c.l.b16 %v102
  %v430 = vunpack.c.h.b16 %v102
  %v431 = vunpack.c.l.b16 %v103
  %v432 = vunpack.c.h.b16 %v103
  %v433 = vunpack.c.l.b16 %v104
  %v434 = vunpack.c.h.b16 %v104
  %v435 = vunpack.c.l.b16 %v105
  %v436 = vunpack.c.h.b16 %v105
  %v437 = vunpack.c.l.b16 %v106
  %v438 = vunpack.c.h.b16 %v106
  %v439 = vunpack.c.l.b16 %v107
  %v440 = vunpack.c.h.b16 %v107
  %v441 = vunpack.c.l.b16 %v108
  %v442 = vunpack.c.h.b16 %v108
  %v443 = vunpack.c.l.b16 %v109
  %v444 = vunpack.c.h.b16 %v109
  %v445 = vunpack.c.l.b16 %v110
  %v446 = vunpack.c.h.b16 %v110
  %v447 = vunpack.c.l.b16 %v111
  %v448 = vunpack.c.h.b16 %v111
  %v449 = vunpack.c.l.b16 %v112
  %v450 = vunpack.c.h.b16 %v112
  %v451 = vunpack.c.l.b16 %v113
  %v452 = vunpack.c.h.b16 %v113
  %v453 = vunpack.c.l.b16 %v114
  %v454 = vunpack.c.h.b16 %v114
  %v455 = vunpack.c.l.b16 %v115
  %v456 = vunpack.c.h.b16 %v115
  %v457 = vunpack.c.l.b16 %v116
  %v458 = vunpack.c.h.b16 %v116
  %v459 = vunpack.c.l.b16 %v117
  %v460 = vunpack.c.h.b16 %v117
  %v461 = vunpack.c.l.b16 %v118
  %v462 = vunpack.c.h.b16 %v118
  %v463 = vpack.c.b16 %v275, %v271
  %v464 = vpack.c.b16 %v276, %v272
  %v465 = vpack.c.b16 %v277, %v273
  %v466 = vpack.c.b16 %v278, %v274
  %v467 = vpack.c.b16 %v283, %v279
  %v468 = vpack.c.b16 %v284, %v280
  %v469 = vpack.c.b16 %v285, %v281
  %v470 = vpack.c.b16 %v286, %v282
  %v471 = vpack.c.b16 %v291, %v287
  %v472 = vpack.c.b16 %v292, %v288
  %v473 = vpack.c.b16 %v293, %v289
  %v474 = vpack.c.b16 %v294, %v290
  %v475 = vpack.c.b16 %v299, %v295
  %v476 = vpack.c.b16 %v300, %v296
  %v477 = vpack.c.b16 %v301, %v297
  %v478 = vpack.c.b16 %v302, %v298
  %v479 = vpack.c.b16 %v307, %v303
  %v480 = vpack.c.b16 %v308, %v304
  %v481 = vpack.c.b16 %v309, %v305
  %v482 = vpack.c.b16 %v310, %v306
  %v483 = vpack.c.b16 %v315, %v311
  %v484 = vpack.c.b16 %v316, %v312
  %v485 = vpack.c.b16 %v317, %v313
  %v486 = vpack.c.b16 %v318, %v314
  %v487 = vpack.c.b16 %v323, %v319
  %v488 = vpack.c.b16 %v324, %v320
  %v489 = vpack.c.b16 %v325, %v321
  %v490 = vpack.c.b16 %v326, %v322
  %v491 = vpack.c.b16 %v331, %v327
  %v492 = vpack.c.b16 %v332, %v328
  %v493 = vpack.c.b16 %v333, %v329
  %v494 = vpack.c.b16 %v334, %v330
  %v495 = vpack.c.b16 %v339, %v335
  %v496 = vpack.c.b16 %v340, %v336
  %v497 = vpack.c.b16 %v341, %v337
  %v498 = vpack.c.b16 %v342, %v338
  %v499 = vpack.c.b16 %v347, %v343
  %v500 = vpack.c.b16 %v348, %v344
  %v501 = vpack.c.b16 %v349, %v345
  %v502 = vpack.c.b16 %v350, %v346
  %v503 = vpack.c.b16 %v355, %v351
  %v504 = vpack.c.b16 %v356, %v352
  %v505 = vpack.c.b16 %v357, %v353
  %v506 = vpack.c.b16 %v358, %v354
  %v507 = vpack.c.b16 %v363, %v359
  %v508 = vpack.c.b16 %v364, %v360
  %v509 = vpack.c.b16 %v365, %v361
  %v510 = vpack.c.b16 %v366, %v362
  %v511 = vpack.c.b16 %v371, %v367
  %v512 = vpack.c.b16 %v372, %v368
  %v513 = vpack.c.b16 %v373, %v369
  %v514 = vpack.c.b16 %v374, %v370
  %v515 = vpack.c.b16 %v379, %v375
  %v516 = vpack.c.b16 %v380, %v376
  %v517 = vpack.c.b16 %v381, %v377
  %v518 = vpack.c.b16 %v382, %v378
  %v519 = vpack.c.b16 %v387, %v383
  %v520 = vpack.c.b16 %v388, %v384
  %v521 = vpack.c.b16 %v389, %v385
  %v522 = vpack.c.b16 %v390, %v386
  %v523 = vpack.c.b16 %v395, %v391
  %v524 = vpack.c.b16 %v396, %v392
  %v525 = vpack.c.b16 %v397, %v393
  %v526 = vpack.c.b16 %v398, %v394
  %v527 = vpack.c.b16 %v403, %v399
  %v528 = vpack.c.b16 %v404, %v400
  %v529 = vpack.c.b16 %v405, %v401
  %v530 = vpack.c.b16 %v406, %v402
  %v531 = vpack.c.b16 %v411, %v407
  %v532 = vpack.c.b16 %v412, %v408
  %v533 = vpack.c.b16 %v413, %v409
  %v534 = vpack.c.b16 %v414, %v410
  %v535 = vpack.c.b16 %v419, %v415
  %v536 = vpack.c.b16 %v420, %v416
  %v537 = vpack.c.b16 %v421, %v417
  %v538 = vpack.c.b16 %v422, %v418
  %v539 = vpack.c.b16 %v427, %v423
  %v540 = vpack.c.b16 %v428, %v424
  %v541 = vpack.c.b16 %v429, %v425
  %v542 = vpack.c.b16 %v430, %v426
  %v543 = vpack.c.b16 %v435, %v431
  %v544 = vpack.c.b16 %v436, %v432
  %v545 = vpack.c.b16 %v437, %v433
  %v546 = vpack.c.b16 %v438, %v434
  %v547 = vpack.c.b16 %v443, %v439
  %v548 = vpack.c.b16 %v444, %v440
  %v549 = vpack.c.b16 %v445, %v441
  %v550 = vpack.c.b16 %v446, %v442
  %v551 = vpack.c.b16 %v451, %v447
  %v552 = vpack.c.b16 %v452, %v448
  %v553 = vpack.c.b16 %v453, %v449
  %v554 = vpack.c.b16 %v454, %v450
  %v555 = vpack.c.b16 %v459, %v455
  %v556 = vpack.c.b16 %v460, %v456
  %v557 = vpack.c.b16 %v461, %v457
  %v558 = vpack.c.b16 %v462, %v458
  %655 = vmatprep.subr.bf16.mxu0 %v464
  %656 = vmatpush1.bf16.msra.mxu0 %v463
  %657 = vmatprep.subr.bf16.mxu0 %v468
  %658 = vmatpush1.bf16.msra.mxu0 %v467
  %659 = vmatprep.subr.bf16.mxu0 %v472
  %660 = vmatpush1.bf16.msra.mxu0 %v471
  %661 = vmatprep.subr.bf16.mxu0 %v476
  %662 = vmatpush1.bf16.msra.mxu0 %v475
  %663 = vmatprep.subr.bf16.mxu0 %v480
  %664 = vmatpush1.bf16.msra.mxu0 %v479
  %665 = vmatprep.subr.bf16.mxu0 %v484
  %666 = vmatpush1.bf16.msra.mxu0 %v483
  %667 = vmatprep.subr.bf16.mxu0 %v488
  %668 = vmatpush1.bf16.msra.mxu0 %v487
  %669 = vmatprep.subr.bf16.mxu0 %v492
  %670 = vmatpush1.bf16.msra.mxu0 %v491
  %671 = vmatprep.subr.bf16.mxu0 %v496
  %672 = vmatpush1.bf16.msra.mxu0 %v495
  %673 = vmatprep.subr.bf16.mxu0 %v500
  %674 = vmatpush1.bf16.msra.mxu0 %v499
  %675 = vmatprep.subr.bf16.mxu0 %v504
  %676 = vmatpush1.bf16.msra.mxu0 %v503
  %677 = vmatprep.subr.bf16.mxu0 %v508
  %678 = vmatpush1.bf16.msra.mxu0 %v507
  %679 = vmatprep.subr.bf16.mxu0 %v512
  %680 = vmatpush1.bf16.msra.mxu0 %v511
  %681 = vmatprep.subr.bf16.mxu0 %v516
  %682 = vmatpush1.bf16.msra.mxu0 %v515
  %683 = vmatprep.subr.bf16.mxu0 %v520
  %684 = vmatpush1.bf16.msra.mxu0 %v519
  %685 = vmatprep.subr.bf16.mxu0 %v524
  %686 = vmatpush1.bf16.msra.mxu0 %v523
  %687 = vmatprep.mubr.bf16.mxu0 %v164
  %688 = vmatmul.mubr.bf16.gmra.mrb[0].mxu0 %v163
  %v689 = vpop.f32.mrb[0].mxu0
  %v690 = vadd.f32 %v126, %v689
  %v691 = vpop.f32.mrb[0].mxu0
  %v692 = vadd.f32 %v126, %v691
  %v693 = vpop.f32.mrb[0].mxu0
  %v694 = vadd.f32 %v131, %v693
  %v695 = vpop.f32.mrb[0].mxu0
  %v696 = vadd.f32 %v131, %v695
  %697 = vmatprep.mubr.bf16.mxu0 %v167
  %698 = vmatmul.mubr.bf16.gmra.mrb[0].mxu0 %v166
  %v699 = vpop.f32.mrb[0].mxu0
  %v700 = vadd.f32 %v136, %v699
  %v701 = vpop.f32.mrb[0].mxu0
  %v702 = vadd.f32 %v136, %v701
  %v703 = vpop.f32.mrb[0].mxu0
  %v704 = vadd.f32 %v141, %v703
  %v705 = vpop.f32.mrb[0].mxu0
  %v706 = vadd.f32 %v141, %v705
  %707 = vdwg.mxu0
  %708 = vmatprep.subr.bf16.mxu0 %v528
  %709 = vmatpush1.bf16.msra.mxu0 %v527
  %710 = vmatprep.subr.bf16.mxu0 %v532
  %711 = vmatpush1.bf16.msra.mxu0 %v531
  %712 = vmatprep.subr.bf16.mxu0 %v536
  %713 = vmatpush1.bf16.msra.mxu0 %v535
  %714 = vmatprep.subr.bf16.mxu0 %v540
  %715 = vmatpush1.bf16.msra.mxu0 %v539
  %716 = vmatprep.subr.bf16.mxu0 %v544
  %717 = vmatpush1.bf16.msra.mxu0 %v543
  %718 = vmatprep.subr.bf16.mxu0 %v548
  %719 = vmatpush1.bf16.msra.mxu0 %v547
  %720 = vmatprep.subr.bf16.mxu0 %v552
  %721 = vmatpush1.bf16.msra.mxu0 %v551
  %722 = vmatprep.subr.bf16.mxu0 %v556
  %723 = vmatpush1.bf16.msra.mxu0 %v555
  %724 = vmatprep.subr.bf16.mxu0 0
  %725 = vmatpush1.bf16.msra.mxu0 0
  %726 = vmatprep.subr.bf16.mxu0 0
  %727 = vmatpush1.bf16.msra.mxu0 0
  %728 = vmatprep.subr.bf16.mxu0 0
  %729 = vmatpush1.bf16.msra.mxu0 0
  %730 = vmatprep.subr.bf16.mxu0 0
  %731 = vmatpush1.bf16.msra.mxu0 0
  %732 = vmatprep.subr.bf16.mxu0 0
  %733 = vmatpush1.bf16.msra.mxu0 0
  %734 = vmatprep.subr.bf16.mxu0 0
  %735 = vmatpush1.bf16.msra.mxu0 0
  %736 = vmatprep.subr.bf16.mxu0 0
  %737 = vmatpush1.bf16.msra.mxu0 0
  %738 = vmatprep.subr.bf16.mxu0 0
  %739 = vmatpush1.bf16.msra.mxu0 0
  %740 = vmatprep.mubr.bf16.mxu0 0
  %741 = vmatmul.mubr.bf16.gmra.mrb[0].mxu0 %v165
  %v742 = vpop.f32.mrb[0].mxu0
  %v743 = vadd.f32 %v690, %v742
  %v744 = vpop.f32.mrb[0].mxu0
  %v745 = vadd.f32 %v692, %v744
  %v746 = vpop.f32.mrb[0].mxu0
  %v747 = vadd.f32 %v694, %v746
  %v748 = vpop.f32.mrb[0].mxu0
  %v749 = vadd.f32 %v696, %v748
  %750 = vmatprep.mubr.bf16.mxu0 0
  %751 = vmatmul.mubr.bf16.gmra.mrb[0].mxu0 %v168
  %v752 = vpop.f32.mrb[0].mxu0
  %v753 = vadd.f32 %v700, %v752
  %v754 = vpop.f32.mrb[0].mxu0
  %v755 = vadd.f32 %v702, %v754
  %v756 = vpop.f32.mrb[0].mxu0
  %v757 = vadd.f32 %v704, %v756
  %v758 = vpop.f32.mrb[0].mxu0
  %v759 = vadd.f32 %v706, %v758
  %760 = vdwg.mxu0
  %761 = vmatprep.subr.bf16.mxu0 %v466
  %762 = vmatpush1.bf16.msra.mxu0 %v465
  %763 = vmatprep.subr.bf16.mxu0 %v470
  %764 = vmatpush1.bf16.msra.mxu0 %v469
  %765 = vmatprep.subr.bf16.mxu0 %v474
  %766 = vmatpush1.bf16.msra.mxu0 %v473
  %767 = vmatprep.subr.bf16.mxu0 %v478
  %768 = vmatpush1.bf16.msra.mxu0 %v477
  %769 = vmatprep.subr.bf16.mxu0 %v482
  %770 = vmatpush1.bf16.msra.mxu0 %v481
  %771 = vmatprep.subr.bf16.mxu0 %v486
  %772 = vmatpush1.bf16.msra.mxu0 %v485
  %773 = vmatprep.subr.bf16.mxu0 %v490
  %774 = vmatpush1.bf16.msra.mxu0 %v489
  %775 = vmatprep.subr.bf16.mxu0 %v494
  %776 = vmatpush1.bf16.msra.mxu0 %v493
  %777 = vmatprep.subr.bf16.mxu0 %v498
  %778 = vmatpush1.bf16.msra.mxu0 %v497
  %779 = vmatprep.subr.bf16.mxu0 %v502
  %780 = vmatpush1.bf16.msra.mxu0 %v501
  %781 = vmatprep.subr.bf16.mxu0 %v506
  %782 = vmatpush1.bf16.msra.mxu0 %v505
  %783 = vmatprep.subr.bf16.mxu0 %v510
  %784 = vmatpush1.bf16.msra.mxu0 %v509
  %785 = vmatprep.subr.bf16.mxu0 %v514
  %786 = vmatpush1.bf16.msra.mxu0 %v513
  %787 = vmatprep.subr.bf16.mxu0 %v518
  %788 = vmatpush1.bf16.msra.mxu0 %v517
  %789 = vmatprep.subr.bf16.mxu0 %v522
  %790 = vmatpush1.bf16.msra.mxu0 %v521
  %791 = vmatprep.subr.bf16.mxu0 %v526
  %792 = vmatpush1.bf16.msra.mxu0 %v525
  %793 = vmatprep.mubr.bf16.mxu0 %v164
  %794 = vmatmul.mubr.bf16.gmra.mrb[0].mxu0 %v163
  %v795 = vpop.f32.mrb[0].mxu0
  %v796 = vadd.f32 %v126, %v795
  %v797 = vpop.f32.mrb[0].mxu0
  %v798 = vadd.f32 %v126, %v797
  %v799 = vpop.f32.mrb[0].mxu0
  %v800 = vadd.f32 %v131, %v799
  %v801 = vpop.f32.mrb[0].mxu0
  %v802 = vadd.f32 %v131, %v801
  %803 = vmatprep.mubr.bf16.mxu0 %v167
  %804 = vmatmul.mubr.bf16.gmra.mrb[0].mxu0 %v166
  %v805 = vpop.f32.mrb[0].mxu0
  %v806 = vadd.f32 %v136, %v805
  %v807 = vpop.f32.mrb[0].mxu0
  %v808 = vadd.f32 %v136, %v807
  %v809 = vpop.f32.mrb[0].mxu0
  %v810 = vadd.f32 %v141, %v809
  %v811 = vpop.f32.mrb[0].mxu0
  %v812 = vadd.f32 %v141, %v811
  %813 = vdwg.mxu0
  %814 = vmatprep.subr.bf16.mxu0 %v530
  %815 = vmatpush1.bf16.msra.mxu0 %v529
  %816 = vmatprep.subr.bf16.mxu0 %v534
  %817 = vmatpush1.bf16.msra.mxu0 %v533
  %818 = vmatprep.subr.bf16.mxu0 %v538
  %819 = vmatpush1.bf16.msra.mxu0 %v537
  %820 = vmatprep.subr.bf16.mxu0 %v542
  %821 = vmatpush1.bf16.msra.mxu0 %v541
  %822 = vmatprep.subr.bf16.mxu0 %v546
  %823 = vmatpush1.bf16.msra.mxu0 %v545
  %824 = vmatprep.subr.bf16.mxu0 %v550
  %825 = vmatpush1.bf16.msra.mxu0 %v549
  %826 = vmatprep.subr.bf16.mxu0 %v554
  %827 = vmatpush1.bf16.msra.mxu0 %v553
  %828 = vmatprep.subr.bf16.mxu0 %v558
  %829 = vmatpush1.bf16.msra.mxu0 %v557
  %830 = vmatprep.subr.bf16.mxu0 0
  %831 = vmatpush1.bf16.msra.mxu0 0
  %832 = vmatprep.subr.bf16.mxu0 0
  %833 = vmatpush1.bf16.msra.mxu0 0
  %834 = vmatprep.subr.bf16.mxu0 0
  %835 = vmatpush1.bf16.msra.mxu0 0
  %836 = vmatprep.subr.bf16.mxu0 0
  %837 = vmatpush1.bf16.msra.mxu0 0
  %838 = vmatprep.subr.bf16.mxu0 0
  %839 = vmatpush1.bf16.msra.mxu0 0
  %840 = vmatprep.subr.bf16.mxu0 0
  %841 = vmatpush1.bf16.msra.mxu0 0
  %842 = vmatprep.subr.bf16.mxu0 0
  %843 = vmatpush1.bf16.msra.mxu0 0
  %844 = vmatprep.subr.bf16.mxu0 0
  %845 = vmatpush1.bf16.msra.mxu0 0
  %846 = vmatprep.mubr.bf16.mxu0 0
  %847 = vmatmul.mubr.bf16.gmra.mrb[0].mxu0 %v165
  %v848 = vpop.f32.mrb[0].mxu0
  %v849 = vadd.f32 %v796, %v848
  %v850 = vpop.f32.mrb[0].mxu0
  %v851 = vadd.f32 %v798, %v850
  %v852 = vpop.f32.mrb[0].mxu0
  %v853 = vadd.f32 %v800, %v852
  %v854 = vpop.f32.mrb[0].mxu0
  %v855 = vadd.f32 %v802, %v854
  %856 = vmatprep.mubr.bf16.mxu0 0
  %857 = vmatmul.mubr.bf16.gmra.mrb[0].mxu0 %v168
  %v858 = vpop.f32.mrb[0].mxu0
  %v859 = vadd.f32 %v806, %v858
  %v860 = vpop.f32.mrb[0].mxu0
  %v861 = vadd.f32 %v808, %v860
  %v862 = vpop.f32.mrb[0].mxu0
  %v863 = vadd.f32 %v810, %v862
  %v864 = vpop.f32.mrb[0].mxu0
  %v865 = vadd.f32 %v812, %v864
  %866 = vdwg.mxu0
  %867 = vst [vmem:[%s3] sm:$0xff] %v743
  %868 = vst [vmem:[%s3 + $0x8] sm:$0xff] %v745
  %869 = vst [vmem:[%s3 + $0x10] sm:$0xff] %v849
  %870 = vst [vmem:[%s3 + $0x18] sm:$0xff] %v851
  %871 = vst [vmem:[%s3 + $0x20] sm:$0xff] %v747
  %872 = vst [vmem:[%s3 + $0x28] sm:$0xff] %v749
  %873 = vst [vmem:[%s3 + $0x30] sm:$0xff] %v853
  %874 = vst [vmem:[%s3 + $0x38] sm:$0xff] %v855
  %875 = vst [vmem:[%s3 + $0x40] sm:$0xff] %v753
  %876 = vst [vmem:[%s3 + $0x48] sm:$0xff] %v755
  %877 = vst [vmem:[%s3 + $0x50] sm:$0xff] %v859
  %878 = vst [vmem:[%s3 + $0x58] sm:$0xff] %v861
  %879 = vst [vmem:[%s3 + $0x60] sm:$0xff] %v757
  %880 = vst [vmem:[%s3 + $0x68] sm:$0xff] %v759
  %881 = vst [vmem:[%s3 + $0x70] sm:$0xff] %v863
  %882 = vst [vmem:[%s3 + $0x78] sm:$0xff] %v865
  // Predicated region
  $region14: #{res_block_forward.4} parent=0 // pred_check
    _
  $region15: #{res_block_forward.4} parent=0 // pred_check_branch
    %884 = sbr.rel (0) target = $region17
  $region16: #{res_block_forward.4} parent=0 // pred_region
    _
  $region17: #{res_block_forward.4} parent=0 // pred_fallthru
    _
  // Predicated region
  $region18: #{res_block_forward.4} parent=0 // pred_check
    _
  $region19: #{res_block_forward.4} parent=0 // pred_check_branch
    %886 = sbr.rel (0) target = $region21
  $region20: #{res_block_forward.4} parent=0 // pred_region
    _
  $region21: #{res_block_forward.4} parent=0 // pred_fallthru
    _

// kernel: res_block_forward.7
$region0: #{res_block_forward.7}
  #allocation0 [shape = 'u32[]', space=smem, size = 0x4, offset = 0x4, fixed_abs, tag = 'smem constant byte address 0x4 - core index']
  #allocation1 [shape = 'u32[144,128]{1,0:T(1,128)}', space=vmem, size = 0x12000, scoped, tag = 'internal scratch']
  %s0 = inlined_call_operand.vmem [shape: f32[64,256], index: 0, kind: input, shape index: {}]
  %s1 = inlined_call_operand.vmem [shape: f32[64,256], index: 1, kind: input, shape index: {}]
  %s2 = inlined_call_operand.vmem [shape: f32[64,256], index: 2, kind: output, shape index: {}]
  %s3 = sld [smem:[#allocation0]]
  $region18: #{res_block_forward.7} parent=0
    _
  %s5 = ssub.s32 1, %s3
  %s6 = scalar_select 0, %s5, %s3
  // Predicated region
  $region2: #{res_block_forward.7} parent=0 // pred_check
    _
  $region3: #{res_block_forward.7} parent=0 // pred_check_branch
    %8 = sbr.rel (0) target = $region5
  $region4: #{res_block_forward.7} parent=0 // pred_region
    _
  $region5: #{res_block_forward.7} parent=0 // pred_fallthru
    _
  // Predicated region
  $region6: #{res_block_forward.7} parent=0 // pred_check
    _
  $region7: #{res_block_forward.7} parent=0 // pred_check_branch
    %10 = sbr.rel (0) target = $region9
  $region8: #{res_block_forward.7} parent=0 // pred_region
    _
  $region9: #{res_block_forward.7} parent=0 // pred_fallthru
    _
  %v11 = vld [vmem:[%s0] sm:$0xff]
  %v12 = vld [vmem:[%s0 + $0x8] sm:$0xff]
  %v13 = vld [vmem:[%s0 + $0x10] sm:$0xff]
  %v14 = vld [vmem:[%s0 + $0x18] sm:$0xff]
  %v15 = vld [vmem:[%s0 + $0x20] sm:$0xff]
  %v16 = vld [vmem:[%s0 + $0x28] sm:$0xff]
  %v17 = vld [vmem:[%s0 + $0x30] sm:$0xff]
  %v18 = vld [vmem:[%s0 + $0x38] sm:$0xff]
  %v19 = vld [vmem:[%s0 + $0x40] sm:$0xff]
  %v20 = vld [vmem:[%s0 + $0x48] sm:$0xff]
  %v21 = vld [vmem:[%s0 + $0x50] sm:$0xff]
  %v22 = vld [vmem:[%s0 + $0x58] sm:$0xff]
  %v23 = vld [vmem:[%s0 + $0x60] sm:$0xff]
  %v24 = vld [vmem:[%s0 + $0x68] sm:$0xff]
  %v25 = vld [vmem:[%s0 + $0x70] sm:$0xff]
  %v26 = vld [vmem:[%s0 + $0x78] sm:$0xff]
  %v27 = vadd.f32 %v11, %v12
  %28 = vadd.xlane.f32.xlu0 %v27
  %v29 = vpop.xlane.xlu0 %28
  %v30 = vadd.f32 %v13, %v14
  %31 = vadd.xlane.f32.xlu0 %v30
  %v32 = vpop.xlane.xlu0 %31
  %v33 = vadd.f32 %v15, %v16
  %34 = vadd.xlane.f32.xlu0 %v33
  %v35 = vpop.xlane.xlu0 %34
  %v36 = vadd.f32 %v17, %v18
  %37 = vadd.xlane.f32.xlu0 %v36
  %v38 = vpop.xlane.xlu0 %37
  %v39 = vadd.f32 %v19, %v20
  %40 = vadd.xlane.f32.xlu0 %v39
  %v41 = vpop.xlane.xlu0 %40
  %v42 = vadd.f32 %v21, %v22
  %43 = vadd.xlane.f32.xlu0 %v42
  %v44 = vpop.xlane.xlu0 %43
  %v45 = vadd.f32 %v23, %v24
  %46 = vadd.xlane.f32.xlu0 %v45
  %v47 = vpop.xlane.xlu0 %46
  %v48 = vadd.f32 %v25, %v26
  %49 = vadd.xlane.f32.xlu0 %v48
  %v50 = vpop.xlane.xlu0 %49
  %v51 = vrcp.pop 256.0
  %v52 = vmul.f32 %v29, %v51
  %v53 = vmul.f32 %v32, %v51
  %v54 = vmul.f32 %v35, %v51
  %v55 = vmul.f32 %v38, %v51
  %v56 = vmul.f32 %v41, %v51
  %v57 = vmul.f32 %v44, %v51
  %v58 = vmul.f32 %v47, %v51
  %v59 = vmul.f32 %v50, %v51
  %v60 = vsub.f32 %v11, %v52
  %v61 = vsub.f32 %v12, %v52
  %v62 = vsub.f32 %v13, %v53
  %v63 = vsub.f32 %v14, %v53
  %v64 = vsub.f32 %v15, %v54
  %v65 = vsub.f32 %v16, %v54
  %v66 = vsub.f32 %v17, %v55
  %v67 = vsub.f32 %v18, %v55
  %v68 = vsub.f32 %v19, %v56
  %v69 = vsub.f32 %v20, %v56
  %v70 = vsub.f32 %v21, %v57
  %v71 = vsub.f32 %v22, %v57
  %v72 = vsub.f32 %v23, %v58
  %v73 = vsub.f32 %v24, %v58
  %v74 = vsub.f32 %v25, %v59
  %v75 = vsub.f32 %v26, %v59
  %v76 = vmul.f32 %v60, %v60
  %v77 = vmul.f32 %v61, %v61
  %v78 = vmul.f32 %v62, %v62
  %v79 = vmul.f32 %v63, %v63
  %v80 = vmul.f32 %v64, %v64
  %v81 = vmul.f32 %v65, %v65
  %v82 = vmul.f32 %v66, %v66
  %v83 = vmul.f32 %v67, %v67
  %v84 = vmul.f32 %v68, %v68
  %v85 = vmul.f32 %v69, %v69
  %v86 = vmul.f32 %v70, %v70
  %v87 = vmul.f32 %v71, %v71
  %v88 = vmul.f32 %v72, %v72
  %v89 = vmul.f32 %v73, %v73
  %v90 = vmul.f32 %v74, %v74
  %v91 = vmul.f32 %v75, %v75
  %v92 = vadd.f32 %v76, %v77
  %93 = vadd.xlane.f32.xlu0 %v92
  %v94 = vpop.xlane.xlu0 %93
  %v95 = vadd.f32 %v78, %v79
  %96 = vadd.xlane.f32.xlu0 %v95
  %v97 = vpop.xlane.xlu0 %96
  %v98 = vadd.f32 %v80, %v81
  %99 = vadd.xlane.f32.xlu0 %v98
  %v100 = vpop.xlane.xlu0 %99
  %v101 = vadd.f32 %v82, %v83
  %102 = vadd.xlane.f32.xlu0 %v101
  %v103 = vpop.xlane.xlu0 %102
  %v104 = vadd.f32 %v84, %v85
  %105 = vadd.xlane.f32.xlu0 %v104
  %v106 = vpop.xlane.xlu0 %105
  %v107 = vadd.f32 %v86, %v87
  %108 = vadd.xlane.f32.xlu0 %v107
  %v109 = vpop.xlane.xlu0 %108
  %v110 = vadd.f32 %v88, %v89
  %111 = vadd.xlane.f32.xlu0 %v110
  %v112 = vpop.xlane.xlu0 %111
  %v113 = vadd.f32 %v90, %v91
  %114 = vadd.xlane.f32.xlu0 %v113
  %v115 = vpop.xlane.xlu0 %114
  %v116 = vmul.f32 %v94, %v51
  %v117 = vmul.f32 %v97, %v51
  %v118 = vmul.f32 %v100, %v51
  %v119 = vmul.f32 %v103, %v51
  %v120 = vmul.f32 %v106, %v51
  %v121 = vmul.f32 %v109, %v51
  %v122 = vmul.f32 %v112, %v51
  %v123 = vmul.f32 %v115, %v51
  %v124 = vadd.f32 %v116, 1e-05
  %v125 = vadd.f32 %v117, 1e-05
  %v126 = vadd.f32 %v118, 1e-05
  %v127 = vadd.f32 %v119, 1e-05
  %v128 = vadd.f32 %v120, 1e-05
  %v129 = vadd.f32 %v121, 1e-05
  %v130 = vadd.f32 %v122, 1e-05
  %v131 = vadd.f32 %v123, 1e-05
  %v132 = vrsqrt.pop %v124
  %v133 = vrsqrt.pop %v125
  %v134 = vrsqrt.pop %v126
  %v135 = vrsqrt.pop %v127
  %v136 = vrsqrt.pop %v128
  %v137 = vrsqrt.pop %v129
  %v138 = vrsqrt.pop %v130
  %v139 = vrsqrt.pop %v131
  %v140 = vmul.f32 %v60, %v132
  %v141 = vmul.f32 %v61, %v132
  %v142 = vmul.f32 %v62, %v133
  %v143 = vmul.f32 %v63, %v133
  %v144 = vmul.f32 %v64, %v134
  %v145 = vmul.f32 %v65, %v134
  %v146 = vmul.f32 %v66, %v135
  %v147 = vmul.f32 %v67, %v135
  %v148 = vmul.f32 %v68, %v136
  %v149 = vmul.f32 %v69, %v136
  %v150 = vmul.f32 %v70, %v137
  %v151 = vmul.f32 %v71, %v137
  %v152 = vmul.f32 %v72, %v138
  %v153 = vmul.f32 %v73, %v138
  %v154 = vmul.f32 %v74, %v139
  %v155 = vmul.f32 %v75, %v139
  %v156 = vld [vmem:[%s1] sm:$0xff]
  %v157 = vld [vmem:[%s1 + $0x8] sm:$0xff]
  %v158 = vld [vmem:[%s1 + $0x10] sm:$0xff]
  %v159 = vld [vmem:[%s1 + $0x18] sm:$0xff]
  %v160 = vld [vmem:[%s1 + $0x20] sm:$0xff]
  %v161 = vld [vmem:[%s1 + $0x28] sm:$0xff]
  %v162 = vld [vmem:[%s1 + $0x30] sm:$0xff]
  %v163 = vld [vmem:[%s1 + $0x38] sm:$0xff]
  %v164 = vld [vmem:[%s1 + $0x40] sm:$0xff]
  %v165 = vld [vmem:[%s1 + $0x48] sm:$0xff]
  %v166 = vld [vmem:[%s1 + $0x50] sm:$0xff]
  %v167 = vld [vmem:[%s1 + $0x58] sm:$0xff]
  %v168 = vld [vmem:[%s1 + $0x60] sm:$0xff]
  %v169 = vld [vmem:[%s1 + $0x68] sm:$0xff]
  %v170 = vld [vmem:[%s1 + $0x70] sm:$0xff]
  %v171 = vld [vmem:[%s1 + $0x78] sm:$0xff]
  %v172 = vadd.f32 %v140, %v156
  %v173 = vadd.f32 %v141, %v157
  %v174 = vadd.f32 %v142, %v158
  %v175 = vadd.f32 %v143, %v159
  %v176 = vadd.f32 %v144, %v160
  %v177 = vadd.f32 %v145, %v161
  %v178 = vadd.f32 %v146, %v162
  %v179 = vadd.f32 %v147, %v163
  %v180 = vadd.f32 %v148, %v164
  %v181 = vadd.f32 %v149, %v165
  %v182 = vadd.f32 %v150, %v166
  %v183 = vadd.f32 %v151, %v167
  %v184 = vadd.f32 %v152, %v168
  %v185 = vadd.f32 %v153, %v169
  %v186 = vadd.f32 %v154, %v170
  %v187 = vadd.f32 %v155, %v171
  %188 = vst [vmem:[%s2] sm:$0xff] %v172
  %189 = vst [vmem:[%s2 + $0x8] sm:$0xff] %v173
  %190 = vst [vmem:[%s2 + $0x10] sm:$0xff] %v174
  %191 = vst [vmem:[%s2 + $0x18] sm:$0xff] %v175
  %192 = vst [vmem:[%s2 + $0x20] sm:$0xff] %v176
  %193 = vst [vmem:[%s2 + $0x28] sm:$0xff] %v177
  %194 = vst [vmem:[%s2 + $0x30] sm:$0xff] %v178
  %195 = vst [vmem:[%s2 + $0x38] sm:$0xff] %v179
  %196 = vst [vmem:[%s2 + $0x40] sm:$0xff] %v180
  %197 = vst [vmem:[%s2 + $0x48] sm:$0xff] %v181
  %198 = vst [vmem:[%s2 + $0x50] sm:$0xff] %v182
  %199 = vst [vmem:[%s2 + $0x58] sm:$0xff] %v183
  %200 = vst [vmem:[%s2 + $0x60] sm:$0xff] %v184
  %201 = vst [vmem:[%s2 + $0x68] sm:$0xff] %v185
  %202 = vst [vmem:[%s2 + $0x70] sm:$0xff] %v186
  %203 = vst [vmem:[%s2 + $0x78] sm:$0xff] %v187
  // Predicated region
  $region10: #{res_block_forward.7} parent=0 // pred_check
    _
  $region11: #{res_block_forward.7} parent=0 // pred_check_branch
    %205 = sbr.rel (0) target = $region13
  $region12: #{res_block_forward.7} parent=0 // pred_region
    _
  $region13: #{res_block_forward.7} parent=0 // pred_fallthru
    _
  // Predicated region
  $region14: #{res_block_forward.7} parent=0 // pred_check
    _
  $region15: #{res_block_forward.7} parent=0 // pred_check_branch
    %207 = sbr.rel (0) target = $region17
  $region16: #{res_block_forward.7} parent=0 // pred_region
    _
  $region17: #{res_block_forward.7} parent=0 // pred_fallthru
    _

</llo_original>
